<compile_context>
chip_gen: v7x
topology: tpu7x:2x2x1
jax: 0.10.0
libtpu: 0.0.40
codegen_flags: <defaults>
</compile_context>

<pallas_src>
import functools

import numpy as np
import jax
import jax.numpy as jnp
from jax.experimental import pallas as pl
from jax.experimental.pallas import tpu as pltpu


def ffn_ctx_packed_kernel(x_ref, bs_ref, w1_ref, b1_ref, w2_ref, b2_ref,
                          sel_ref, o_ref, *, mxu_dtype):
    # Packed 2-layer MLP: weights are block-diagonal kron(I_P, W), so every
    # group of d_* lanes is an independent token.
    x = x_ref[...].astype(mxu_dtype)                                   # (tp, P*d_in)
    h = jnp.dot(x, w1_ref[...], preferred_element_type=jnp.float32)    # (tp, P*d_hid)
    h = jnp.maximum(h + b1_ref[...], 0.0)                              # ReLU, f32
    y = jnp.dot(h.astype(mxu_dtype), w2_ref[...],
                preferred_element_type=jnp.float32)                    # (tp, P*d_out)
    y = y + b2_ref[...]

    # Contextual masking: tokens with binary_seq in {-1, 2} are zeroed.
    bs = bs_ref[...]                                                   # (tp, P) int32
    keep = jnp.where((bs == -1) | (bs == 2), 0.0, 1.0)                 # (tp, P) f32
    # Widen the per-token keep to the packed output lanes with a constant 0/1
    # selection matmul (exact even in bf16); avoids a lane-repeat relayout.
    keep_w = jnp.dot(keep.astype(mxu_dtype), sel_ref[...],
                     preferred_element_type=jnp.float32)               # (tp, P*d_out)

    o_ref[...] = (y * keep_w).astype(o_ref.dtype)


def feedforward_contextual(inp, binary_seq, params, *, block_rows=None,
                           mxu_dtype=jnp.bfloat16, pack=None):
    w1, b1, w2, b2 = params
    n, d_in = inp.shape
    d_hid = w1.shape[1]
    d_out = w2.shape[1]

    # --- Token-packing factor: aim for a ~128-lane packed output.
    if pack is None:
        pack = max(1, min(16, 128 // max(d_out, 1)))
        while pack > 1 and pack * max(d_in, d_hid, d_out) > 4096:
            pack //= 2
    P = int(pack)

    rows = -(-n // P)                       # packed rows needed
    rows8 = -(-rows // 8) * 8               # sublane-aligned row count

    # --- Packed-row tile: >= ~2K tokens/step, aim for >= 8 grid steps when
    # there is enough work (v7x has 2 TensorCores), cap per-step VMEM.
    if block_rows is None:
        tp = min(2048, max(128, -(-rows // 8)))
    else:
        tp = int(block_rows)
    tp = max(8, -(-tp // 8) * 8)
    tp = min(tp, rows8)
    rows_pad = -(-rows // tp) * tp
    n_pad = rows_pad * P
    grid = (rows_pad // tp,)

    # --- Pack activations & binary_seq (contiguous reshapes are free).
    x = inp
    bs = binary_seq.reshape(-1).astype(jnp.int32)
    if n_pad != n:
        x = jnp.pad(x, ((0, n_pad - n), (0, 0)))
        bs = jnp.pad(bs, (0, n_pad - n), constant_values=-1)   # padded tokens zeroed
    x_p = x.reshape(rows_pad, P * d_in)
    bs_p = bs.reshape(rows_pad, P)

    # --- Block-diagonal weights / tiled biases (tiny, VMEM-resident).
    eye = jnp.eye(P, dtype=jnp.float32)
    w1_bd = jnp.kron(eye, w1.astype(jnp.float32)).astype(mxu_dtype)          # (P*d_in, P*d_hid)
    w2_bd = jnp.kron(eye, w2.astype(jnp.float32)).astype(mxu_dtype)          # (P*d_hid, P*d_out)
    b1_t = jnp.tile(b1.astype(jnp.float32), P).reshape(1, P * d_hid)
    b2_t = jnp.tile(b2.astype(jnp.float32), P).reshape(1, P * d_out)
    sel = jnp.kron(eye, jnp.ones((1, d_out), jnp.float32)).astype(mxu_dtype)  # (P, P*d_out)

    # --- Honest VMEM budget: lane-padded streamed buffers (x, bs, out) plus
    # resident weights, one 2x double-buffer factor, small margin; <= 64 MiB.
    rup = lambda v, m: -(-v // m) * m
    x_bytes = np.dtype(x.dtype).itemsize
    w_bytes = np.dtype(mxu_dtype).itemsize
    stream = tp * (rup(P * d_in, 128) * x_bytes
                   + rup(P, 128) * 4
                   + rup(P * d_out, 128) * 4)
    weights = (rup(P * d_in, 16) * rup(P * d_hid, 128)
               + rup(P * d_hid, 16) * rup(P * d_out, 128)
               + rup(P, 16) * rup(P * d_out, 128)) * w_bytes \
              + 8 * (rup(P * d_hid, 128) + rup(P * d_out, 128)) * 4
    vmem_limit = int(min(max(2 * (stream + weights) + (4 << 20), 8 << 20), 64 << 20))

    kernel = functools.partial(ffn_ctx_packed_kernel, mxu_dtype=mxu_dtype)

    main_packed = pl.pallas_call(
        kernel,
        out_shape=jax.ShapeDtypeStruct((rows_pad, P * d_out), jnp.float32),
        grid_spec=pltpu.PrefetchScalarGridSpec(
            num_scalar_prefetch=0,
            grid=grid,
            in_specs=[
                pl.BlockSpec((tp, P * d_in), lambda i: (i, 0)),          # packed activations
                pl.BlockSpec((tp, P), lambda i: (i, 0)),                 # packed binary_seq
                pl.BlockSpec((P * d_in, P * d_hid), lambda i: (0, 0)),   # w1 block-diag (resident)
                pl.BlockSpec((1, P * d_hid), lambda i: (0, 0)),          # b1 (tiled)
                pl.BlockSpec((P * d_hid, P * d_out), lambda i: (0, 0)),  # w2 block-diag
                pl.BlockSpec((1, P * d_out), lambda i: (0, 0)),          # b2 (tiled)
                pl.BlockSpec((P, P * d_out), lambda i: (0, 0)),          # keep-mask selector
            ],
            out_specs=pl.BlockSpec((tp, P * d_out), lambda i: (i, 0)),
        ),
        compiler_params=pltpu.CompilerParams(
            dimension_semantics=("parallel",),
            vmem_limit_bytes=vmem_limit,
        ),
    )(x_p, bs_p, w1_bd, b1_t, w2_bd, b2_t, sel)

    # --- Unpack (free reshape of a contiguous buffer) + flag column.  The flag
    # compute fuses into this single XLA concat pass.
    main = main_packed.reshape(n_pad, d_out)
    if n_pad != n:
        main = main[:n]
    flag = (binary_seq.reshape(-1) == 2).astype(jnp.float32)[:, None]
    return jnp.concatenate([main, flag], axis=-1)


def init_params(key, d_in, d_hid, d_out):
    # Deterministic nn.Linear-style init: U(-1/sqrt(fan_in), 1/sqrt(fan_in)).
    k1, k2, k3, k4 = jax.random.split(key, 4)
    lim1 = 1.0 / jnp.sqrt(d_in)
    lim2 = 1.0 / jnp.sqrt(d_hid)
    w1 = jax.random.uniform(k1, (d_in, d_hid), jnp.float32, -lim1, lim1)
    b1 = jax.random.uniform(k2, (d_hid,), jnp.float32, -lim1, lim1)
    w2 = jax.random.uniform(k3, (d_hid, d_out), jnp.float32, -lim2, lim2)
    b2 = jax.random.uniform(k4, (d_out,), jnp.float32, -lim2, lim2)
    return (w1, b1, w2, b2)


def reference(inp, binary_seq, params):
    w1, b1, w2, b2 = params
    main = jnp.maximum(inp @ w1 + b1, 0.0) @ w2 + b2
    mask = (binary_seq == -1) | (binary_seq == 2)
    main = jnp.where(mask[:, None], 0.0, main)
    flag = (binary_seq == 2).astype(jnp.float32)[:, None]
    return jnp.concatenate([main, flag], axis=-1)


if __name__ == "__main__":
    key = jax.random.PRNGKey(0)
    k_inp, k_seq, k_par = jax.random.split(key, 3)

    # Small shapes consistent with the module: seq=8, d_in=16, hid=32, d_out=8.
    N, D_IN, D_HID, D_OUT = 8, 16, 32, 8
    inp = jax.random.normal(k_inp, (N, D_IN), dtype=jnp.float32)
    binary_seq = jax.random.randint(k_seq, (N,), minval=-1, maxval=3,
                                    dtype=jnp.int32)  # values in {-1,0,1,2}
    params = init_params(k_par, D_IN, D_HID, D_OUT)
    ref = reference(inp, binary_seq, params)

    # Case 1: default path (bf16 MXU operands, f32 accumulation / epilogue).
    out = jax.block_until_ready(feedforward_contextual(inp, binary_seq, params))
    assert out.shape == (N, D_OUT + 1)
    assert jnp.allclose(out, ref, atol=5e-2, rtol=5e-2), "bf16 mismatch (case 1)"

    # Case 2: f32 MXU operands; N not divisible by the packing factor
    # (exercises padding) and block_rows=8 (exercises a multi-step grid).
    N2 = 300
    k_inp2, k_seq2 = jax.random.split(k_inp)
    inp2 = jax.random.normal(k_inp2, (N2, D_IN), dtype=jnp.float32)
    bs2 = jax.random.randint(k_seq2, (N2,), minval=-1, maxval=3, dtype=jnp.int32)
    ref2 = reference(inp2, bs2, params)
    out2 = jax.block_until_ready(
        feedforward_contextual(inp2, bs2, params,
                               mxu_dtype=jnp.float32, block_rows=8))
    assert out2.shape == (N2, D_OUT + 1)
    assert jnp.allclose(out2, ref2, atol=1e-4, rtol=1e-4), "f32 mismatch (case 2)"

    # Case 3: default bf16 path on the padded / larger case.
    out3 = jax.block_until_ready(feedforward_contextual(inp2, bs2, params))
    assert out3.shape == (N2, D_OUT + 1)
    assert jnp.allclose(out3, ref2, atol=5e-2, rtol=5e-2), "bf16 mismatch (case 3)"

    print("KERNEL_OK")
</pallas_src>

<mosaic_0001>
module attributes {stable_mosaic.version = 11 : i64} {
  func.func @ffn_ctx_packed_kernel(%arg0: i32, %arg1: memref<8x256xf32, #tpu.memory_space<vmem>>, %arg2: memref<8x16xi32, #tpu.memory_space<vmem>>, %arg3: memref<256x512xbf16, #tpu.memory_space<vmem>>, %arg4: memref<1x512xf32, #tpu.memory_space<vmem>>, %arg5: memref<512x128xbf16, #tpu.memory_space<vmem>>, %arg6: memref<1x128xf32, #tpu.memory_space<vmem>>, %arg7: memref<16x128xbf16, #tpu.memory_space<vmem>>, %arg8: memref<8x128xf32, #tpu.memory_space<vmem>>) attributes {dimension_semantics = [#tpu.dimension_semantics<parallel>], iteration_bounds = array<i64: 1>, scalar_prefetch = 0 : i64, scratch_operands = 0 : i64, tpu.core_type = #tpu.core_type<tc>, window_params = [{transform_indices = @transform_0, window_bounds = array<i64: 8, 256>}, {transform_indices = @transform_1, window_bounds = array<i64: 8, 16>}, {pipeline_mode = #tpu.pipeline_mode<synchronous>, transform_indices = @transform_2, window_bounds = array<i64: 256, 512>}, {pipeline_mode = #tpu.pipeline_mode<synchronous>, transform_indices = @transform_3, window_bounds = array<i64: 1, 512>}, {pipeline_mode = #tpu.pipeline_mode<synchronous>, transform_indices = @transform_4, window_bounds = array<i64: 512, 128>}, {pipeline_mode = #tpu.pipeline_mode<synchronous>, transform_indices = @transform_5, window_bounds = array<i64: 1, 128>}, {pipeline_mode = #tpu.pipeline_mode<synchronous>, transform_indices = @transform_6, window_bounds = array<i64: 16, 128>}, {transform_indices = @transform_7, window_bounds = array<i64: 8, 128>}]} {
    %c0 = arith.constant 0 : index
    %c0_0 = arith.constant 0 : index
    %0 = vector.load %arg1[%c0, %c0_0] : memref<8x256xf32, #tpu.memory_space<vmem>>, vector<8x256xf32>
    %1 = arith.truncf %0 : vector<8x256xf32> to vector<8x256xbf16>
    %c0_1 = arith.constant 0 : index
    %c0_2 = arith.constant 0 : index
    %2 = vector.load %arg3[%c0_1, %c0_2] : memref<256x512xbf16, #tpu.memory_space<vmem>>, vector<256x512xbf16>
    %cst = arith.constant dense<0.000000e+00> : vector<8x512xf32>
    %3 = tpu.matmul %1, %2, %cst {dimension_numbers = #tpu.dot_dimension_numbers<[1], [0], [0], [1], [0, 0, 1, 1], [], []>} : vector<8x256xbf16>, vector<256x512xbf16>, vector<8x512xf32> -> vector<8x512xf32>
    %c0_3 = arith.constant 0 : index
    %c0_4 = arith.constant 0 : index
    %4 = vector.load %arg4[%c0_3, %c0_4] : memref<1x512xf32, #tpu.memory_space<vmem>>, vector<1x512xf32>
    %5 = vector.broadcast %4 : vector<1x512xf32> to vector<8x512xf32>
    %6 = arith.addf %3, %5 : vector<8x512xf32>
    %cst_5 = arith.constant 0.000000e+00 : f32
    %7 = vector.broadcast %cst_5 : f32 to vector<8x512xf32>
    %8 = arith.maximumf %6, %7 : vector<8x512xf32>
    %9 = arith.truncf %8 : vector<8x512xf32> to vector<8x512xbf16>
    %c0_6 = arith.constant 0 : index
    %c0_7 = arith.constant 0 : index
    %10 = vector.load %arg5[%c0_6, %c0_7] : memref<512x128xbf16, #tpu.memory_space<vmem>>, vector<512x128xbf16>
    %cst_8 = arith.constant dense<0.000000e+00> : vector<8x128xf32>
    %11 = tpu.matmul %9, %10, %cst_8 {dimension_numbers = #tpu.dot_dimension_numbers<[1], [0], [0], [1], [0, 0, 1, 1], [], []>} : vector<8x512xbf16>, vector<512x128xbf16>, vector<8x128xf32> -> vector<8x128xf32>
    %c0_9 = arith.constant 0 : index
    %c0_10 = arith.constant 0 : index
    %12 = vector.load %arg6[%c0_9, %c0_10] : memref<1x128xf32, #tpu.memory_space<vmem>>, vector<1x128xf32>
    %13 = vector.broadcast %12 : vector<1x128xf32> to vector<8x128xf32>
    %14 = arith.addf %11, %13 : vector<8x128xf32>
    %c0_11 = arith.constant 0 : index
    %c0_12 = arith.constant 0 : index
    %15 = vector.load %arg2[%c0_11, %c0_12] : memref<8x16xi32, #tpu.memory_space<vmem>>, vector<8x16xi32>
    %c-1_i32 = arith.constant -1 : i32
    %16 = vector.broadcast %c-1_i32 : i32 to vector<8x16xi32>
    %17 = arith.cmpi eq, %15, %16 : vector<8x16xi32>
    %c2_i32 = arith.constant 2 : i32
    %18 = vector.broadcast %c2_i32 : i32 to vector<8x16xi32>
    %19 = arith.cmpi eq, %15, %18 : vector<8x16xi32>
    %20 = arith.ori %17, %19 : vector<8x16xi1>
    %cst_13 = arith.constant 0.000000e+00 : f32
    %cst_14 = arith.constant 1.000000e+00 : f32
    %21 = vector.broadcast %cst_13 : f32 to vector<8x16xf32>
    %22 = vector.broadcast %cst_14 : f32 to vector<8x16xf32>
    %23 = arith.select %20, %21, %22 : vector<8x16xi1>, vector<8x16xf32>
    %24 = arith.truncf %23 : vector<8x16xf32> to vector<8x16xbf16>
    %c0_15 = arith.constant 0 : index
    %c0_16 = arith.constant 0 : index
    %25 = vector.load %arg7[%c0_15, %c0_16] : memref<16x128xbf16, #tpu.memory_space<vmem>>, vector<16x128xbf16>
    %cst_17 = arith.constant dense<0.000000e+00> : vector<8x128xf32>
    %26 = tpu.matmul %24, %25, %cst_17 {dimension_numbers = #tpu.dot_dimension_numbers<[1], [0], [0], [1], [0, 0, 1, 1], [], []>} : vector<8x16xbf16>, vector<16x128xbf16>, vector<8x128xf32> -> vector<8x128xf32>
    %27 = arith.mulf %14, %26 : vector<8x128xf32>
    %c0_18 = arith.constant 0 : index
    %c0_19 = arith.constant 0 : index
    %28 = vector.load %arg8[%c0_18, %c0_19] : memref<8x128xf32, #tpu.memory_space<vmem>>, vector<8x128xf32>
    tpu.vector_store %arg8[%c0_18, %c0_19], %27 {strides = array<i32>} : memref<8x128xf32, #tpu.memory_space<vmem>>, vector<8x128xf32>,
    return
  }
  func.func @transform_0(%arg0: i32) -> (i32, i32) {
    %c0_i32 = arith.constant 0 : i32
    %c0_i32_0 = arith.constant 0 : i32
    return %arg0, %c0_i32 : i32, i32
  }
  func.func @transform_1(%arg0: i32) -> (i32, i32) {
    %c0_i32 = arith.constant 0 : i32
    %c0_i32_0 = arith.constant 0 : i32
    return %arg0, %c0_i32 : i32, i32
  }
  func.func @transform_2(%arg0: i32) -> (i32, i32) {
    %c0_i32 = arith.constant 0 : i32
    %c0_i32_0 = arith.constant 0 : i32
    %c0_i32_1 = arith.constant 0 : i32
    return %c0_i32, %c0_i32_0 : i32, i32
  }
  func.func @transform_3(%arg0: i32) -> (i32, i32) {
    %c0_i32 = arith.constant 0 : i32
    %c0_i32_0 = arith.constant 0 : i32
    %c0_i32_1 = arith.constant 0 : i32
    return %c0_i32, %c0_i32_0 : i32, i32
  }
  func.func @transform_4(%arg0: i32) -> (i32, i32) {
    %c0_i32 = arith.constant 0 : i32
    %c0_i32_0 = arith.constant 0 : i32
    %c0_i32_1 = arith.constant 0 : i32
    return %c0_i32, %c0_i32_0 : i32, i32
  }
  func.func @transform_5(%arg0: i32) -> (i32, i32) {
    %c0_i32 = arith.constant 0 : i32
    %c0_i32_0 = arith.constant 0 : i32
    %c0_i32_1 = arith.constant 0 : i32
    return %c0_i32, %c0_i32_0 : i32, i32
  }
  func.func @transform_6(%arg0: i32) -> (i32, i32) {
    %c0_i32 = arith.constant 0 : i32
    %c0_i32_0 = arith.constant 0 : i32
    %c0_i32_1 = arith.constant 0 : i32
    return %c0_i32, %c0_i32_0 : i32, i32
  }
  func.func @transform_7(%arg0: i32) -> (i32, i32) {
    %c0_i32 = arith.constant 0 : i32
    %c0_i32_0 = arith.constant 0 : i32
    return %arg0, %c0_i32 : i32, i32
  }
}

</mosaic_0001>

<llo_original>
// kernel: tpu_custom_call.1
$region0: #{tpu_custom_call.1}
  #allocation0 [shape = 'u32[]', space=smem, size = 0x4, offset = 0x4, fixed_abs, tag = 'smem constant byte address 0x4 - core index']
  #allocation1 [shape = 'u32[144,128]{1,0:T(1,128)}', space=vmem, size = 0x12000, scoped, tag = 'internal scratch']
  %s0 = inlined_call_operand.hbm [shape: f32[8,256], index: 0, kind: input, shape index: {}]
  %s1 = inlined_call_operand.hbm [shape: s32[8,16], index: 1, kind: input, shape index: {}]
  %s2 = inlined_call_operand.hbm [shape: bf16[256,512], index: 2, kind: input, shape index: {}]
  %s3 = inlined_call_operand.vmem [shape: f32[1,512], index: 3, kind: input, shape index: {}]
  %s4 = inlined_call_operand.hbm [shape: bf16[512,128], index: 4, kind: input, shape index: {}]
  %s5 = inlined_call_operand.vmem [shape: f32[1,128], index: 5, kind: input, shape index: {}]
  %s6 = inlined_call_operand.vmem [shape: bf16[16,128], index: 6, kind: input, shape index: {}]
  %s7 = inlined_call_operand.hbm [shape: f32[8,128], index: 7, kind: output, shape index: {}]
  %s8 = sld [smem:[#allocation0]]
  $region54: #{tpu_custom_call.1} parent=0
    _
  %s10 = ssub.s32 1, %s8
  %s11 = scalar_select 0, %s10, %s8
  $region1: #{tpu_custom_call.1} parent=0
    #allocation2 [shape = 'u8[8192]{0}', space=vmem, size = 0x2000, scoped, tag = 'input window, operand 0, single buffered']
    #allocation3 [shape = 's32[1]{0}', space=sflag, size = 0x4, scoped, tag = 'scoped memory for tpu_custom_call.1']
    #allocation4 [shape = 's32[1]{0}', space=sflag, size = 0x4, scoped, tag = 'scoped memory for tpu_custom_call.1']
    #allocation5 [shape = 'u8[4096]{0}', space=vmem, size = 0x1000, scoped, tag = 'input window, operand 1, single buffered']
    #allocation6 [shape = 's32[1]{0}', space=sflag, size = 0x4, scoped, tag = 'scoped memory for tpu_custom_call.1']
    #allocation7 [shape = 'u8[262144]{0}', space=vmem, size = 0x40000, scoped, tag = 'input window, operand 2, single buffered']
    #allocation8 [shape = 'u8[131072]{0}', space=vmem, size = 0x20000, scoped, tag = 'input window, operand 4, single buffered']
    #allocation9 [shape = 's32[1]{0}', space=sflag, size = 0x4, scoped, tag = 'scoped memory for tpu_custom_call.1']
    #allocation10 [shape = 'u8[4096]{0}', space=vmem, size = 0x1000, scoped, tag = 'output window, operand 0, single buffered']
    %12 = vsyncpa [#allocation3], 0
    %13 = vsyncpa [#allocation6], 0
    %14 = vsyncpa [#allocation9], 0
    %15 = vsyncpa [#allocation4], 0
    // Predicated region
    $region2: #{tpu_custom_call.1} parent=1 // pred_check
      _
    $region3: #{tpu_custom_call.1} parent=1 // pred_check_branch
      %17 = sbr.rel (0) target = $region5
    $region4: #{tpu_custom_call.1} parent=1 // pred_region
      %s19 = ssub.s32 256, 256
      %20 = vsyncadd [#allocation3], %s19
      %s22 = sshll.u32 [#allocation2], 4
      %s23 = int_to_ptr.vmem [resolvable:$true] %s22
      %25 = dma.hbm_to_vmem [thread:$0]  %s0, 256, %s23, [#allocation3]
    $region5: #{tpu_custom_call.1} parent=1 // pred_fallthru
      _
    // Predicated region
    $region6: #{tpu_custom_call.1} parent=1 // pred_check
      _
    $region7: #{tpu_custom_call.1} parent=1 // pred_check_branch
      %27 = sbr.rel (0) target = $region9
    $region8: #{tpu_custom_call.1} parent=1 // pred_region
      %s29 = ssub.s32 128, 128
      %30 = vsyncadd [#allocation6], %s29
      %s32 = sshll.u32 [#allocation5], 4
      %s33 = int_to_ptr.vmem [resolvable:$true] %s32
      %35 = dma.hbm_to_vmem [thread:$0]  %s1, 128, %s33, [#allocation6]
    $region9: #{tpu_custom_call.1} parent=1 // pred_fallthru
      _
    // Predicated region
    $region10: #{tpu_custom_call.1} parent=1 // pred_check
      _
    $region11: #{tpu_custom_call.1} parent=1 // pred_check_branch
      %37 = sbr.rel (0) target = $region13
    $region12: #{tpu_custom_call.1} parent=1 // pred_region
      %s39 = ssub.s32 8192, 8192
      %40 = vsyncadd [#allocation6], %s39
      %s41 = sshll.u32 [#allocation7], 4
      %s42 = int_to_ptr.vmem [resolvable:$true] %s41
      %47 = dma.hbm_to_vmem [thread:$0]  %s2, 8192, %s42, [#allocation6], 256, 256, 16
    $region13: #{tpu_custom_call.1} parent=1 // pred_fallthru
      _
    // Predicated region
    $region14: #{tpu_custom_call.1} parent=1 // pred_check
      _
    $region15: #{tpu_custom_call.1} parent=1 // pred_check_branch
      %49 = sbr.rel (0) target = $region17
    $region16: #{tpu_custom_call.1} parent=1 // pred_region
      _
    $region17: #{tpu_custom_call.1} parent=1 // pred_fallthru
      _
    // Predicated region
    $region18: #{tpu_custom_call.1} parent=1 // pred_check
      _
    $region19: #{tpu_custom_call.1} parent=1 // pred_check_branch
      %51 = sbr.rel (0) target = $region21
    $region20: #{tpu_custom_call.1} parent=1 // pred_region
      %s53 = ssub.s32 4096, 4096
      %54 = vsyncadd [#allocation9], %s53
      %s55 = sshll.u32 [#allocation8], 4
      %s56 = int_to_ptr.vmem [resolvable:$true] %s55
      %61 = dma.hbm_to_vmem [thread:$0]  %s4, 4096, %s56, [#allocation9], 64, 64, 4
    $region21: #{tpu_custom_call.1} parent=1 // pred_fallthru
      _
    // Predicated region
    $region22: #{tpu_custom_call.1} parent=1 // pred_check
      _
    $region23: #{tpu_custom_call.1} parent=1 // pred_check_branch
      %63 = sbr.rel (0) target = $region25
    $region24: #{tpu_custom_call.1} parent=1 // pred_region
      _
    $region25: #{tpu_custom_call.1} parent=1 // pred_fallthru
      _
    // Predicated region
    $region26: #{tpu_custom_call.1} parent=1 // pred_check
      _
    $region27: #{tpu_custom_call.1} parent=1 // pred_check_branch
      %65 = sbr.rel (0) target = $region29
    $region28: #{tpu_custom_call.1} parent=1 // pred_region
      _
    $region29: #{tpu_custom_call.1} parent=1 // pred_fallthru
      _
    // Predicated region
    $region30: #{tpu_custom_call.1} parent=1 // pred_check
      _
    $region31: #{tpu_custom_call.1} parent=1 // pred_check_branch
      %67 = sbr.rel (0) target = $region33
    $region32: #{tpu_custom_call.1} parent=1 // pred_region
      %68 = dma.done [#allocation3], 256
    $region33: #{tpu_custom_call.1} parent=1 // pred_fallthru
      _
    // Predicated region
    $region34: #{tpu_custom_call.1} parent=1 // pred_check
      _
    $region35: #{tpu_custom_call.1} parent=1 // pred_check_branch
      %70 = sbr.rel (0) target = $region37
    $region36: #{tpu_custom_call.1} parent=1 // pred_region
      %71 = dma.done [#allocation6], 128
    $region37: #{tpu_custom_call.1} parent=1 // pred_fallthru
      _
    // Predicated region
    $region38: #{tpu_custom_call.1} parent=1 // pred_check
      _
    $region39: #{tpu_custom_call.1} parent=1 // pred_check_branch
      %73 = sbr.rel (0) target = $region41
    $region40: #{tpu_custom_call.1} parent=1 // pred_region
      %74 = dma.done [#allocation6], 8192
    $region41: #{tpu_custom_call.1} parent=1 // pred_fallthru
      _
    // Predicated region
    $region42: #{tpu_custom_call.1} parent=1 // pred_check
      _
    $region43: #{tpu_custom_call.1} parent=1 // pred_check_branch
      %76 = sbr.rel (0) target = $region45
    $region44: #{tpu_custom_call.1} parent=1 // pred_region
      %77 = dma.done [#allocation9], 4096
    $region45: #{tpu_custom_call.1} parent=1 // pred_fallthru
      _
    %v79 = vld [vmem:[#allocation2] sm:$0xff]
    %v80 = vld [vmem:[#allocation2 + $0x8] sm:$0xff]
    %v81 = vpack.c.bf16 %v79, %v79
    %v82 = vpack.c.bf16 %v80, %v80
    %v83 = vld [vmem:[#allocation7] sm:$0xff]
    %v84 = vld [vmem:[#allocation7 + $0x8] sm:$0xff]
    %v85 = vld [vmem:[#allocation7 + $0x10] sm:$0xff]
    %v86 = vld [vmem:[#allocation7 + $0x18] sm:$0xff]
    %v87 = vld [vmem:[#allocation7 + $0x20] sm:$0xff]
    %v88 = vld [vmem:[#allocation7 + $0x28] sm:$0xff]
    %v89 = vld [vmem:[#allocation7 + $0x30] sm:$0xff]
    %v90 = vld [vmem:[#allocation7 + $0x38] sm:$0xff]
    %v91 = vld [vmem:[#allocation7 + $0x40] sm:$0xff]
    %v92 = vld [vmem:[#allocation7 + $0x48] sm:$0xff]
    %v93 = vld [vmem:[#allocation7 + $0x50] sm:$0xff]
    %v94 = vld [vmem:[#allocation7 + $0x58] sm:$0xff]
    %v95 = vld [vmem:[#allocation7 + $0x60] sm:$0xff]
    %v96 = vld [vmem:[#allocation7 + $0x68] sm:$0xff]
    %v97 = vld [vmem:[#allocation7 + $0x70] sm:$0xff]
    %v98 = vld [vmem:[#allocation7 + $0x78] sm:$0xff]
    %v99 = vld [vmem:[#allocation7 + $0x80] sm:$0xff]
    %v100 = vld [vmem:[#allocation7 + $0x88] sm:$0xff]
    %v101 = vld [vmem:[#allocation7 + $0x90] sm:$0xff]
    %v102 = vld [vmem:[#allocation7 + $0x98] sm:$0xff]
    %v103 = vld [vmem:[#allocation7 + $0xa0] sm:$0xff]
    %v104 = vld [vmem:[#allocation7 + $0xa8] sm:$0xff]
    %v105 = vld [vmem:[#allocation7 + $0xb0] sm:$0xff]
    %v106 = vld [vmem:[#allocation7 + $0xb8] sm:$0xff]
    %v107 = vld [vmem:[#allocation7 + $0xc0] sm:$0xff]
    %v108 = vld [vmem:[#allocation7 + $0xc8] sm:$0xff]
    %v109 = vld [vmem:[#allocation7 + $0xd0] sm:$0xff]
    %v110 = vld [vmem:[#allocation7 + $0xd8] sm:$0xff]
    %v111 = vld [vmem:[#allocation7 + $0xe0] sm:$0xff]
    %v112 = vld [vmem:[#allocation7 + $0xe8] sm:$0xff]
    %v113 = vld [vmem:[#allocation7 + $0xf0] sm:$0xff]
    %v114 = vld [vmem:[#allocation7 + $0xf8] sm:$0xff]
    %v115 = vld [vmem:[#allocation7 + $0x100] sm:$0xff]
    %v116 = vld [vmem:[#allocation7 + $0x108] sm:$0xff]
    %v117 = vld [vmem:[#allocation7 + $0x110] sm:$0xff]
    %v118 = vld [vmem:[#allocation7 + $0x118] sm:$0xff]
    %v119 = vld [vmem:[#allocation7 + $0x120] sm:$0xff]
    %v120 = vld [vmem:[#allocation7 + $0x128] sm:$0xff]
    %v121 = vld [vmem:[#allocation7 + $0x130] sm:$0xff]
    %v122 = vld [vmem:[#allocation7 + $0x138] sm:$0xff]
    %v123 = vld [vmem:[#allocation7 + $0x140] sm:$0xff]
    %v124 = vld [vmem:[#allocation7 + $0x148] sm:$0xff]
    %v125 = vld [vmem:[#allocation7 + $0x150] sm:$0xff]
    %v126 = vld [vmem:[#allocation7 + $0x158] sm:$0xff]
    %v127 = vld [vmem:[#allocation7 + $0x160] sm:$0xff]
    %v128 = vld [vmem:[#allocation7 + $0x168] sm:$0xff]
    %v129 = vld [vmem:[#allocation7 + $0x170] sm:$0xff]
    %v130 = vld [vmem:[#allocation7 + $0x178] sm:$0xff]
    %v131 = vld [vmem:[#allocation7 + $0x180] sm:$0xff]
    %v132 = vld [vmem:[#allocation7 + $0x188] sm:$0xff]
    %v133 = vld [vmem:[#allocation7 + $0x190] sm:$0xff]
    %v134 = vld [vmem:[#allocation7 + $0x198] sm:$0xff]
    %v135 = vld [vmem:[#allocation7 + $0x1a0] sm:$0xff]
    %v136 = vld [vmem:[#allocation7 + $0x1a8] sm:$0xff]
    %v137 = vld [vmem:[#allocation7 + $0x1b0] sm:$0xff]
    %v138 = vld [vmem:[#allocation7 + $0x1b8] sm:$0xff]
    %v139 = vld [vmem:[#allocation7 + $0x1c0] sm:$0xff]
    %v140 = vld [vmem:[#allocation7 + $0x1c8] sm:$0xff]
    %v141 = vld [vmem:[#allocation7 + $0x1d0] sm:$0xff]
    %v142 = vld [vmem:[#allocation7 + $0x1d8] sm:$0xff]
    %v143 = vld [vmem:[#allocation7 + $0x1e0] sm:$0xff]
    %v144 = vld [vmem:[#allocation7 + $0x1e8] sm:$0xff]
    %v145 = vld [vmem:[#allocation7 + $0x1f0] sm:$0xff]
    %v146 = vld [vmem:[#allocation7 + $0x1f8] sm:$0xff]
    %v147 = vld [vmem:[%s3] sm:$0xf]
    %v149 = vlaneseq
    %v150 = vshrl.u32 %v149, 7
    %v151 = vsub.s32 0, %v150
    %v152 = vrot.slane %v147, %v151
    %v153 = vlaneseq
    %v154 = vshrl.u32 %v153, 7
    %v155 = vsub.s32 1, %v154
    %v156 = vrot.slane %v147, %v155
    %v157 = vlaneseq
    %v158 = vshrl.u32 %v157, 7
    %v159 = vsub.s32 2, %v158
    %v160 = vrot.slane %v147, %v159
    %v161 = vlaneseq
    %v162 = vshrl.u32 %v161, 7
    %v163 = vsub.s32 3, %v162
    %v164 = vrot.slane %v147, %v163
    %v233 = vunpack.c.l.b16 %v83
    %v234 = vunpack.c.h.b16 %v83
    %v235 = vunpack.c.l.b16 %v84
    %v236 = vunpack.c.h.b16 %v84
    %v237 = vunpack.c.l.b16 %v85
    %v238 = vunpack.c.h.b16 %v85
    %v239 = vunpack.c.l.b16 %v86
    %v240 = vunpack.c.h.b16 %v86
    %v241 = vunpack.c.l.b16 %v87
    %v242 = vunpack.c.h.b16 %v87
    %v243 = vunpack.c.l.b16 %v88
    %v244 = vunpack.c.h.b16 %v88
    %v245 = vunpack.c.l.b16 %v89
    %v246 = vunpack.c.h.b16 %v89
    %v247 = vunpack.c.l.b16 %v90
    %v248 = vunpack.c.h.b16 %v90
    %v249 = vunpack.c.l.b16 %v91
    %v250 = vunpack.c.h.b16 %v91
    %v251 = vunpack.c.l.b16 %v92
    %v252 = vunpack.c.h.b16 %v92
    %v253 = vunpack.c.l.b16 %v93
    %v254 = vunpack.c.h.b16 %v93
    %v255 = vunpack.c.l.b16 %v94
    %v256 = vunpack.c.h.b16 %v94
    %v257 = vunpack.c.l.b16 %v95
    %v258 = vunpack.c.h.b16 %v95
    %v259 = vunpack.c.l.b16 %v96
    %v260 = vunpack.c.h.b16 %v96
    %v261 = vunpack.c.l.b16 %v97
    %v262 = vunpack.c.h.b16 %v97
    %v263 = vunpack.c.l.b16 %v98
    %v264 = vunpack.c.h.b16 %v98
    %v265 = vunpack.c.l.b16 %v99
    %v266 = vunpack.c.h.b16 %v99
    %v267 = vunpack.c.l.b16 %v100
    %v268 = vunpack.c.h.b16 %v100
    %v269 = vunpack.c.l.b16 %v101
    %v270 = vunpack.c.h.b16 %v101
    %v271 = vunpack.c.l.b16 %v102
    %v272 = vunpack.c.h.b16 %v102
    %v273 = vunpack.c.l.b16 %v103
    %v274 = vunpack.c.h.b16 %v103
    %v275 = vunpack.c.l.b16 %v104
    %v276 = vunpack.c.h.b16 %v104
    %v277 = vunpack.c.l.b16 %v105
    %v278 = vunpack.c.h.b16 %v105
    %v279 = vunpack.c.l.b16 %v106
    %v280 = vunpack.c.h.b16 %v106
    %v281 = vunpack.c.l.b16 %v107
    %v282 = vunpack.c.h.b16 %v107
    %v283 = vunpack.c.l.b16 %v108
    %v284 = vunpack.c.h.b16 %v108
    %v285 = vunpack.c.l.b16 %v109
    %v286 = vunpack.c.h.b16 %v109
    %v287 = vunpack.c.l.b16 %v110
    %v288 = vunpack.c.h.b16 %v110
    %v289 = vunpack.c.l.b16 %v111
    %v290 = vunpack.c.h.b16 %v111
    %v291 = vunpack.c.l.b16 %v112
    %v292 = vunpack.c.h.b16 %v112
    %v293 = vunpack.c.l.b16 %v113
    %v294 = vunpack.c.h.b16 %v113
    %v295 = vunpack.c.l.b16 %v114
    %v296 = vunpack.c.h.b16 %v114
    %v297 = vunpack.c.l.b16 %v115
    %v298 = vunpack.c.h.b16 %v115
    %v299 = vunpack.c.l.b16 %v116
    %v300 = vunpack.c.h.b16 %v116
    %v301 = vunpack.c.l.b16 %v117
    %v302 = vunpack.c.h.b16 %v117
    %v303 = vunpack.c.l.b16 %v118
    %v304 = vunpack.c.h.b16 %v118
    %v305 = vunpack.c.l.b16 %v119
    %v306 = vunpack.c.h.b16 %v119
    %v307 = vunpack.c.l.b16 %v120
    %v308 = vunpack.c.h.b16 %v120
    %v309 = vunpack.c.l.b16 %v121
    %v310 = vunpack.c.h.b16 %v121
    %v311 = vunpack.c.l.b16 %v122
    %v312 = vunpack.c.h.b16 %v122
    %v313 = vunpack.c.l.b16 %v123
    %v314 = vunpack.c.h.b16 %v123
    %v315 = vunpack.c.l.b16 %v124
    %v316 = vunpack.c.h.b16 %v124
    %v317 = vunpack.c.l.b16 %v125
    %v318 = vunpack.c.h.b16 %v125
    %v319 = vunpack.c.l.b16 %v126
    %v320 = vunpack.c.h.b16 %v126
    %v321 = vunpack.c.l.b16 %v127
    %v322 = vunpack.c.h.b16 %v127
    %v323 = vunpack.c.l.b16 %v128
    %v324 = vunpack.c.h.b16 %v128
    %v325 = vunpack.c.l.b16 %v129
    %v326 = vunpack.c.h.b16 %v129
    %v327 = vunpack.c.l.b16 %v130
    %v328 = vunpack.c.h.b16 %v130
    %v329 = vunpack.c.l.b16 %v131
    %v330 = vunpack.c.h.b16 %v131
    %v331 = vunpack.c.l.b16 %v132
    %v332 = vunpack.c.h.b16 %v132
    %v333 = vunpack.c.l.b16 %v133
    %v334 = vunpack.c.h.b16 %v133
    %v335 = vunpack.c.l.b16 %v134
    %v336 = vunpack.c.h.b16 %v134
    %v337 = vunpack.c.l.b16 %v135
    %v338 = vunpack.c.h.b16 %v135
    %v339 = vunpack.c.l.b16 %v136
    %v340 = vunpack.c.h.b16 %v136
    %v341 = vunpack.c.l.b16 %v137
    %v342 = vunpack.c.h.b16 %v137
    %v343 = vunpack.c.l.b16 %v138
    %v344 = vunpack.c.h.b16 %v138
    %v345 = vunpack.c.l.b16 %v139
    %v346 = vunpack.c.h.b16 %v139
    %v347 = vunpack.c.l.b16 %v140
    %v348 = vunpack.c.h.b16 %v140
    %v349 = vunpack.c.l.b16 %v141
    %v350 = vunpack.c.h.b16 %v141
    %v351 = vunpack.c.l.b16 %v142
    %v352 = vunpack.c.h.b16 %v142
    %v353 = vunpack.c.l.b16 %v143
    %v354 = vunpack.c.h.b16 %v143
    %v355 = vunpack.c.l.b16 %v144
    %v356 = vunpack.c.h.b16 %v144
    %v357 = vunpack.c.l.b16 %v145
    %v358 = vunpack.c.h.b16 %v145
    %v359 = vunpack.c.l.b16 %v146
    %v360 = vunpack.c.h.b16 %v146
    %v361 = vpack.c.b16 %v237, %v233
    %v362 = vpack.c.b16 %v238, %v234
    %v363 = vpack.c.b16 %v239, %v235
    %v364 = vpack.c.b16 %v240, %v236
    %v365 = vpack.c.b16 %v245, %v241
    %v366 = vpack.c.b16 %v246, %v242
    %v367 = vpack.c.b16 %v247, %v243
    %v368 = vpack.c.b16 %v248, %v244
    %v369 = vpack.c.b16 %v253, %v249
    %v370 = vpack.c.b16 %v254, %v250
    %v371 = vpack.c.b16 %v255, %v251
    %v372 = vpack.c.b16 %v256, %v252
    %v373 = vpack.c.b16 %v261, %v257
    %v374 = vpack.c.b16 %v262, %v258
    %v375 = vpack.c.b16 %v263, %v259
    %v376 = vpack.c.b16 %v264, %v260
    %v377 = vpack.c.b16 %v269, %v265
    %v378 = vpack.c.b16 %v270, %v266
    %v379 = vpack.c.b16 %v271, %v267
    %v380 = vpack.c.b16 %v272, %v268
    %v381 = vpack.c.b16 %v277, %v273
    %v382 = vpack.c.b16 %v278, %v274
    %v383 = vpack.c.b16 %v279, %v275
    %v384 = vpack.c.b16 %v280, %v276
    %v385 = vpack.c.b16 %v285, %v281
    %v386 = vpack.c.b16 %v286, %v282
    %v387 = vpack.c.b16 %v287, %v283
    %v388 = vpack.c.b16 %v288, %v284
    %v389 = vpack.c.b16 %v293, %v289
    %v390 = vpack.c.b16 %v294, %v290
    %v391 = vpack.c.b16 %v295, %v291
    %v392 = vpack.c.b16 %v296, %v292
    %v393 = vpack.c.b16 %v301, %v297
    %v394 = vpack.c.b16 %v302, %v298
    %v395 = vpack.c.b16 %v303, %v299
    %v396 = vpack.c.b16 %v304, %v300
    %v397 = vpack.c.b16 %v309, %v305
    %v398 = vpack.c.b16 %v310, %v306
    %v399 = vpack.c.b16 %v311, %v307
    %v400 = vpack.c.b16 %v312, %v308
    %v401 = vpack.c.b16 %v317, %v313
    %v402 = vpack.c.b16 %v318, %v314
    %v403 = vpack.c.b16 %v319, %v315
    %v404 = vpack.c.b16 %v320, %v316
    %v405 = vpack.c.b16 %v325, %v321
    %v406 = vpack.c.b16 %v326, %v322
    %v407 = vpack.c.b16 %v327, %v323
    %v408 = vpack.c.b16 %v328, %v324
    %v409 = vpack.c.b16 %v333, %v329
    %v410 = vpack.c.b16 %v334, %v330
    %v411 = vpack.c.b16 %v335, %v331
    %v412 = vpack.c.b16 %v336, %v332
    %v413 = vpack.c.b16 %v341, %v337
    %v414 = vpack.c.b16 %v342, %v338
    %v415 = vpack.c.b16 %v343, %v339
    %v416 = vpack.c.b16 %v344, %v340
    %v417 = vpack.c.b16 %v349, %v345
    %v418 = vpack.c.b16 %v350, %v346
    %v419 = vpack.c.b16 %v351, %v347
    %v420 = vpack.c.b16 %v352, %v348
    %v421 = vpack.c.b16 %v357, %v353
    %v422 = vpack.c.b16 %v358, %v354
    %v423 = vpack.c.b16 %v359, %v355
    %v424 = vpack.c.b16 %v360, %v356
    %489 = vmatprep.subr.bf16.mxu0 %v362
    %490 = vmatpush1.bf16.msra.mxu0 %v361
    %491 = vmatprep.subr.bf16.mxu0 %v366
    %492 = vmatpush1.bf16.msra.mxu0 %v365
    %493 = vmatprep.subr.bf16.mxu0 %v370
    %494 = vmatpush1.bf16.msra.mxu0 %v369
    %495 = vmatprep.subr.bf16.mxu0 %v374
    %496 = vmatpush1.bf16.msra.mxu0 %v373
    %497 = vmatprep.subr.bf16.mxu0 %v378
    %498 = vmatpush1.bf16.msra.mxu0 %v377
    %499 = vmatprep.subr.bf16.mxu0 %v382
    %500 = vmatpush1.bf16.msra.mxu0 %v381
    %501 = vmatprep.subr.bf16.mxu0 %v386
    %502 = vmatpush1.bf16.msra.mxu0 %v385
    %503 = vmatprep.subr.bf16.mxu0 %v390
    %504 = vmatpush1.bf16.msra.mxu0 %v389
    %505 = vmatprep.subr.bf16.mxu0 %v394
    %506 = vmatpush1.bf16.msra.mxu0 %v393
    %507 = vmatprep.subr.bf16.mxu0 %v398
    %508 = vmatpush1.bf16.msra.mxu0 %v397
    %509 = vmatprep.subr.bf16.mxu0 %v402
    %510 = vmatpush1.bf16.msra.mxu0 %v401
    %511 = vmatprep.subr.bf16.mxu0 %v406
    %512 = vmatpush1.bf16.msra.mxu0 %v405
    %513 = vmatprep.subr.bf16.mxu0 %v410
    %514 = vmatpush1.bf16.msra.mxu0 %v409
    %515 = vmatprep.subr.bf16.mxu0 %v414
    %516 = vmatpush1.bf16.msra.mxu0 %v413
    %517 = vmatprep.subr.bf16.mxu0 %v418
    %518 = vmatpush1.bf16.msra.mxu0 %v417
    %519 = vmatprep.subr.bf16.mxu0 %v422
    %520 = vmatpush1.bf16.msra.mxu0 %v421
    %521 = vmatprep.mubr.bf16.mxu0 %v82
    %522 = vmatmul.mubr.bf16.gmra.mrb[0].mxu0 %v81
    %v523 = vpop.f32.mrb[0].mxu0
    %v524 = vadd.f32 %v152, %v523
    %v525 = vpop.f32.mrb[0].mxu0
    %v526 = vadd.f32 %v156, %v525
    %v527 = vpop.f32.mrb[0].mxu0
    %v528 = vpop.f32.mrb[0].mxu0
    %529 = vdwg.mxu0
    %530 = vmatprep.subr.bf16.mxu0 %v364
    %531 = vmatpush1.bf16.msra.mxu0 %v363
    %532 = vmatprep.subr.bf16.mxu0 %v368
    %533 = vmatpush1.bf16.msra.mxu0 %v367
    %534 = vmatprep.subr.bf16.mxu0 %v372
    %535 = vmatpush1.bf16.msra.mxu0 %v371
    %536 = vmatprep.subr.bf16.mxu0 %v376
    %537 = vmatpush1.bf16.msra.mxu0 %v375
    %538 = vmatprep.subr.bf16.mxu0 %v380
    %539 = vmatpush1.bf16.msra.mxu0 %v379
    %540 = vmatprep.subr.bf16.mxu0 %v384
    %541 = vmatpush1.bf16.msra.mxu0 %v383
    %542 = vmatprep.subr.bf16.mxu0 %v388
    %543 = vmatpush1.bf16.msra.mxu0 %v387
    %544 = vmatprep.subr.bf16.mxu0 %v392
    %545 = vmatpush1.bf16.msra.mxu0 %v391
    %546 = vmatprep.subr.bf16.mxu0 %v396
    %547 = vmatpush1.bf16.msra.mxu0 %v395
    %548 = vmatprep.subr.bf16.mxu0 %v400
    %549 = vmatpush1.bf16.msra.mxu0 %v399
    %550 = vmatprep.subr.bf16.mxu0 %v404
    %551 = vmatpush1.bf16.msra.mxu0 %v403
    %552 = vmatprep.subr.bf16.mxu0 %v408
    %553 = vmatpush1.bf16.msra.mxu0 %v407
    %554 = vmatprep.subr.bf16.mxu0 %v412
    %555 = vmatpush1.bf16.msra.mxu0 %v411
    %556 = vmatprep.subr.bf16.mxu0 %v416
    %557 = vmatpush1.bf16.msra.mxu0 %v415
    %558 = vmatprep.subr.bf16.mxu0 %v420
    %559 = vmatpush1.bf16.msra.mxu0 %v419
    %560 = vmatprep.subr.bf16.mxu0 %v424
    %561 = vmatpush1.bf16.msra.mxu0 %v423
    %562 = vmatprep.mubr.bf16.mxu0 %v82
    %563 = vmatmul.mubr.bf16.gmra.mrb[0].mxu0 %v81
    %v564 = vpop.f32.mrb[0].mxu0
    %v565 = vadd.f32 %v160, %v564
    %v566 = vpop.f32.mrb[0].mxu0
    %v567 = vadd.f32 %v164, %v566
    %v568 = vpop.f32.mrb[0].mxu0
    %v569 = vpop.f32.mrb[0].mxu0
    %570 = vdwg.mxu0
    %v571 = vmax.f32 %v524, 0.0
    %v572 = vmax.f32 %v526, 0.0
    %v573 = vmax.f32 %v565, 0.0
    %v574 = vmax.f32 %v567, 0.0
    %v575 = vpack.c.bf16 %v571, %v571
    %v576 = vpack.c.bf16 %v572, %v572
    %v577 = vpack.c.bf16 %v573, %v573
    %v578 = vpack.c.bf16 %v574, %v574
    %v579 = vld [vmem:[#allocation8] sm:$0xf]
    %v580 = vld [vmem:[#allocation8 + $0x4] sm:$0xf]
    %v581 = vld [vmem:[#allocation8 + $0x8] sm:$0xf]
    %v582 = vld [vmem:[#allocation8 + $0xc] sm:$0xf]
    %v583 = vld [vmem:[#allocation8 + $0x10] sm:$0xf]
    %v584 = vld [vmem:[#allocation8 + $0x14] sm:$0xf]
    %v585 = vld [vmem:[#allocation8 + $0x18] sm:$0xf]
    %v586 = vld [vmem:[#allocation8 + $0x1c] sm:$0xf]
    %v587 = vld [vmem:[#allocation8 + $0x20] sm:$0xf]
    %v588 = vld [vmem:[#allocation8 + $0x24] sm:$0xf]
    %v589 = vld [vmem:[#allocation8 + $0x28] sm:$0xf]
    %v590 = vld [vmem:[#allocation8 + $0x2c] sm:$0xf]
    %v591 = vld [vmem:[#allocation8 + $0x30] sm:$0xf]
    %v592 = vld [vmem:[#allocation8 + $0x34] sm:$0xf]
    %v593 = vld [vmem:[#allocation8 + $0x38] sm:$0xf]
    %v594 = vld [vmem:[#allocation8 + $0x3c] sm:$0xf]
    %v595 = vld [vmem:[#allocation8 + $0x40] sm:$0xf]
    %v596 = vld [vmem:[#allocation8 + $0x44] sm:$0xf]
    %v597 = vld [vmem:[#allocation8 + $0x48] sm:$0xf]
    %v598 = vld [vmem:[#allocation8 + $0x4c] sm:$0xf]
    %v599 = vld [vmem:[#allocation8 + $0x50] sm:$0xf]
    %v600 = vld [vmem:[#allocation8 + $0x54] sm:$0xf]
    %v601 = vld [vmem:[#allocation8 + $0x58] sm:$0xf]
    %v602 = vld [vmem:[#allocation8 + $0x5c] sm:$0xf]
    %v603 = vld [vmem:[#allocation8 + $0x60] sm:$0xf]
    %v604 = vld [vmem:[#allocation8 + $0x64] sm:$0xf]
    %v605 = vld [vmem:[#allocation8 + $0x68] sm:$0xf]
    %v606 = vld [vmem:[#allocation8 + $0x6c] sm:$0xf]
    %v607 = vld [vmem:[#allocation8 + $0x70] sm:$0xf]
    %v608 = vld [vmem:[#allocation8 + $0x74] sm:$0xf]
    %v609 = vld [vmem:[#allocation8 + $0x78] sm:$0xf]
    %v610 = vld [vmem:[#allocation8 + $0x7c] sm:$0xf]
    %v611 = vld [vmem:[#allocation8 + $0x80] sm:$0xf]
    %v612 = vld [vmem:[#allocation8 + $0x84] sm:$0xf]
    %v613 = vld [vmem:[#allocation8 + $0x88] sm:$0xf]
    %v614 = vld [vmem:[#allocation8 + $0x8c] sm:$0xf]
    %v615 = vld [vmem:[#allocation8 + $0x90] sm:$0xf]
    %v616 = vld [vmem:[#allocation8 + $0x94] sm:$0xf]
    %v617 = vld [vmem:[#allocation8 + $0x98] sm:$0xf]
    %v618 = vld [vmem:[#allocation8 + $0x9c] sm:$0xf]
    %v619 = vld [vmem:[#allocation8 + $0xa0] sm:$0xf]
    %v620 = vld [vmem:[#allocation8 + $0xa4] sm:$0xf]
    %v621 = vld [vmem:[#allocation8 + $0xa8] sm:$0xf]
    %v622 = vld [vmem:[#allocation8 + $0xac] sm:$0xf]
    %v623 = vld [vmem:[#allocation8 + $0xb0] sm:$0xf]
    %v624 = vld [vmem:[#allocation8 + $0xb4] sm:$0xf]
    %v625 = vld [vmem:[#allocation8 + $0xb8] sm:$0xf]
    %v626 = vld [vmem:[#allocation8 + $0xbc] sm:$0xf]
    %v627 = vld [vmem:[#allocation8 + $0xc0] sm:$0xf]
    %v628 = vld [vmem:[#allocation8 + $0xc4] sm:$0xf]
    %v629 = vld [vmem:[#allocation8 + $0xc8] sm:$0xf]
    %v630 = vld [vmem:[#allocation8 + $0xcc] sm:$0xf]
    %v631 = vld [vmem:[#allocation8 + $0xd0] sm:$0xf]
    %v632 = vld [vmem:[#allocation8 + $0xd4] sm:$0xf]
    %v633 = vld [vmem:[#allocation8 + $0xd8] sm:$0xf]
    %v634 = vld [vmem:[#allocation8 + $0xdc] sm:$0xf]
    %v635 = vld [vmem:[#allocation8 + $0xe0] sm:$0xf]
    %v636 = vld [vmem:[#allocation8 + $0xe4] sm:$0xf]
    %v637 = vld [vmem:[#allocation8 + $0xe8] sm:$0xf]
    %v638 = vld [vmem:[#allocation8 + $0xec] sm:$0xf]
    %v639 = vld [vmem:[#allocation8 + $0xf0] sm:$0xf]
    %v640 = vld [vmem:[#allocation8 + $0xf4] sm:$0xf]
    %v641 = vld [vmem:[#allocation8 + $0xf8] sm:$0xf]
    %v642 = vld [vmem:[#allocation8 + $0xfc] sm:$0xf]
    %v643 = vld [vmem:[%s5] sm:$0x1]
    %v645 = vlaneseq
    %v646 = vshrl.u32 %v645, 7
    %v647 = vsub.s32 0, %v646
    %v648 = vrot.slane %v643, %v647
    %v714 = vunpack.c.l.b16 %v579
    %v715 = vunpack.c.l.b16 %v580
    %v716 = vunpack.c.l.b16 %v581
    %v717 = vunpack.c.l.b16 %v582
    %v718 = vunpack.c.l.b16 %v583
    %v719 = vunpack.c.l.b16 %v584
    %v720 = vunpack.c.l.b16 %v585
    %v721 = vunpack.c.l.b16 %v586
    %v722 = vunpack.c.l.b16 %v587
    %v723 = vunpack.c.l.b16 %v588
    %v724 = vunpack.c.l.b16 %v589
    %v725 = vunpack.c.l.b16 %v590
    %v726 = vunpack.c.l.b16 %v591
    %v727 = vunpack.c.l.b16 %v592
    %v728 = vunpack.c.l.b16 %v593
    %v729 = vunpack.c.l.b16 %v594
    %v730 = vunpack.c.l.b16 %v595
    %v731 = vunpack.c.l.b16 %v596
    %v732 = vunpack.c.l.b16 %v597
    %v733 = vunpack.c.l.b16 %v598
    %v734 = vunpack.c.l.b16 %v599
    %v735 = vunpack.c.l.b16 %v600
    %v736 = vunpack.c.l.b16 %v601
    %v737 = vunpack.c.l.b16 %v602
    %v738 = vunpack.c.l.b16 %v603
    %v739 = vunpack.c.l.b16 %v604
    %v740 = vunpack.c.l.b16 %v605
    %v741 = vunpack.c.l.b16 %v606
    %v742 = vunpack.c.l.b16 %v607
    %v743 = vunpack.c.l.b16 %v608
    %v744 = vunpack.c.l.b16 %v609
    %v745 = vunpack.c.l.b16 %v610
    %v746 = vunpack.c.l.b16 %v611
    %v747 = vunpack.c.l.b16 %v612
    %v748 = vunpack.c.l.b16 %v613
    %v749 = vunpack.c.l.b16 %v614
    %v750 = vunpack.c.l.b16 %v615
    %v751 = vunpack.c.l.b16 %v616
    %v752 = vunpack.c.l.b16 %v617
    %v753 = vunpack.c.l.b16 %v618
    %v754 = vunpack.c.l.b16 %v619
    %v755 = vunpack.c.l.b16 %v620
    %v756 = vunpack.c.l.b16 %v621
    %v757 = vunpack.c.l.b16 %v622
    %v758 = vunpack.c.l.b16 %v623
    %v759 = vunpack.c.l.b16 %v624
    %v760 = vunpack.c.l.b16 %v625
    %v761 = vunpack.c.l.b16 %v626
    %v762 = vunpack.c.l.b16 %v627
    %v763 = vunpack.c.l.b16 %v628
    %v764 = vunpack.c.l.b16 %v629
    %v765 = vunpack.c.l.b16 %v630
    %v766 = vunpack.c.l.b16 %v631
    %v767 = vunpack.c.l.b16 %v632
    %v768 = vunpack.c.l.b16 %v633
    %v769 = vunpack.c.l.b16 %v634
    %v770 = vunpack.c.l.b16 %v635
    %v771 = vunpack.c.l.b16 %v636
    %v772 = vunpack.c.l.b16 %v637
    %v773 = vunpack.c.l.b16 %v638
    %v774 = vunpack.c.l.b16 %v639
    %v775 = vunpack.c.l.b16 %v640
    %v776 = vunpack.c.l.b16 %v641
    %v777 = vunpack.c.l.b16 %v642
    %v778 = vpack.c.b16 %v715, %v714
    %v779 = vpack.c.b16 %v717, %v716
    %v780 = vpack.c.b16 %v719, %v718
    %v781 = vpack.c.b16 %v721, %v720
    %v782 = vpack.c.b16 %v723, %v722
    %v783 = vpack.c.b16 %v725, %v724
    %v784 = vpack.c.b16 %v727, %v726
    %v785 = vpack.c.b16 %v729, %v728
    %v786 = vpack.c.b16 %v731, %v730
    %v787 = vpack.c.b16 %v733, %v732
    %v788 = vpack.c.b16 %v735, %v734
    %v789 = vpack.c.b16 %v737, %v736
    %v790 = vpack.c.b16 %v739, %v738
    %v791 = vpack.c.b16 %v741, %v740
    %v792 = vpack.c.b16 %v743, %v742
    %v793 = vpack.c.b16 %v745, %v744
    %v794 = vpack.c.b16 %v747, %v746
    %v795 = vpack.c.b16 %v749, %v748
    %v796 = vpack.c.b16 %v751, %v750
    %v797 = vpack.c.b16 %v753, %v752
    %v798 = vpack.c.b16 %v755, %v754
    %v799 = vpack.c.b16 %v757, %v756
    %v800 = vpack.c.b16 %v759, %v758
    %v801 = vpack.c.b16 %v761, %v760
    %v802 = vpack.c.b16 %v763, %v762
    %v803 = vpack.c.b16 %v765, %v764
    %v804 = vpack.c.b16 %v767, %v766
    %v805 = vpack.c.b16 %v769, %v768
    %v806 = vpack.c.b16 %v771, %v770
    %v807 = vpack.c.b16 %v773, %v772
    %v808 = vpack.c.b16 %v775, %v774
    %v809 = vpack.c.b16 %v777, %v776
    %842 = vmatprep.subr.bf16.mxu0 0
    %843 = vmatpush1.bf16.msra.mxu0 %v778
    %844 = vmatprep.subr.bf16.mxu0 0
    %845 = vmatpush1.bf16.msra.mxu0 %v779
    %846 = vmatprep.subr.bf16.mxu0 0
    %847 = vmatpush1.bf16.msra.mxu0 %v780
    %848 = vmatprep.subr.bf16.mxu0 0
    %849 = vmatpush1.bf16.msra.mxu0 %v781
    %850 = vmatprep.subr.bf16.mxu0 0
    %851 = vmatpush1.bf16.msra.mxu0 %v782
    %852 = vmatprep.subr.bf16.mxu0 0
    %853 = vmatpush1.bf16.msra.mxu0 %v783
    %854 = vmatprep.subr.bf16.mxu0 0
    %855 = vmatpush1.bf16.msra.mxu0 %v784
    %856 = vmatprep.subr.bf16.mxu0 0
    %857 = vmatpush1.bf16.msra.mxu0 %v785
    %858 = vmatprep.subr.bf16.mxu0 0
    %859 = vmatpush1.bf16.msra.mxu0 %v786
    %860 = vmatprep.subr.bf16.mxu0 0
    %861 = vmatpush1.bf16.msra.mxu0 %v787
    %862 = vmatprep.subr.bf16.mxu0 0
    %863 = vmatpush1.bf16.msra.mxu0 %v788
    %864 = vmatprep.subr.bf16.mxu0 0
    %865 = vmatpush1.bf16.msra.mxu0 %v789
    %866 = vmatprep.subr.bf16.mxu0 0
    %867 = vmatpush1.bf16.msra.mxu0 %v790
    %868 = vmatprep.subr.bf16.mxu0 0
    %869 = vmatpush1.bf16.msra.mxu0 %v791
    %870 = vmatprep.subr.bf16.mxu0 0
    %871 = vmatpush1.bf16.msra.mxu0 %v792
    %872 = vmatprep.subr.bf16.mxu0 0
    %873 = vmatpush1.bf16.msra.mxu0 %v793
    %874 = vmatprep.mubr.bf16.mxu0 %v576
    %875 = vmatmul.mubr.bf16.gmra.mrb[0].mxu0 %v575
    %v876 = vpop.f32.mrb[0].mxu0
    %v877 = vadd.f32 %v648, %v876
    %v878 = vpop.f32.mrb[0].mxu0
    %v879 = vpop.f32.mrb[0].mxu0
    %v880 = vpop.f32.mrb[0].mxu0
    %881 = vdwg.mxu0
    %882 = vmatprep.subr.bf16.mxu0 0
    %883 = vmatpush1.bf16.msra.mxu0 %v794
    %884 = vmatprep.subr.bf16.mxu0 0
    %885 = vmatpush1.bf16.msra.mxu0 %v795
    %886 = vmatprep.subr.bf16.mxu0 0
    %887 = vmatpush1.bf16.msra.mxu0 %v796
    %888 = vmatprep.subr.bf16.mxu0 0
    %889 = vmatpush1.bf16.msra.mxu0 %v797
    %890 = vmatprep.subr.bf16.mxu0 0
    %891 = vmatpush1.bf16.msra.mxu0 %v798
    %892 = vmatprep.subr.bf16.mxu0 0
    %893 = vmatpush1.bf16.msra.mxu0 %v799
    %894 = vmatprep.subr.bf16.mxu0 0
    %895 = vmatpush1.bf16.msra.mxu0 %v800
    %896 = vmatprep.subr.bf16.mxu0 0
    %897 = vmatpush1.bf16.msra.mxu0 %v801
    %898 = vmatprep.subr.bf16.mxu0 0
    %899 = vmatpush1.bf16.msra.mxu0 %v802
    %900 = vmatprep.subr.bf16.mxu0 0
    %901 = vmatpush1.bf16.msra.mxu0 %v803
    %902 = vmatprep.subr.bf16.mxu0 0
    %903 = vmatpush1.bf16.msra.mxu0 %v804
    %904 = vmatprep.subr.bf16.mxu0 0
    %905 = vmatpush1.bf16.msra.mxu0 %v805
    %906 = vmatprep.subr.bf16.mxu0 0
    %907 = vmatpush1.bf16.msra.mxu0 %v806
    %908 = vmatprep.subr.bf16.mxu0 0
    %909 = vmatpush1.bf16.msra.mxu0 %v807
    %910 = vmatprep.subr.bf16.mxu0 0
    %911 = vmatpush1.bf16.msra.mxu0 %v808
    %912 = vmatprep.subr.bf16.mxu0 0
    %913 = vmatpush1.bf16.msra.mxu0 %v809
    %914 = vmatprep.mubr.bf16.mxu0 %v578
    %915 = vmatmul.mubr.bf16.gmra.mrb[0].mxu0 %v577
    %v916 = vpop.f32.mrb[0].mxu0
    %v917 = vadd.f32 %v877, %v916
    %v918 = vpop.f32.mrb[0].mxu0
    %v919 = vpop.f32.mrb[0].mxu0
    %v920 = vpop.f32.mrb[0].mxu0
    %921 = vdwg.mxu0
    %v922 = vld [vmem:[#allocation5] sm:$0xff]
    %vm923 = vcmp.eq.s32.totalorder %v922, 4294967295
    %vm924 = vcmp.eq.s32.totalorder %v922, 2
    %vm925 = vmor %vm923, %vm924
    %v926 = vsel %vm925, 0.0, 1.0
    %v927 = vpack.c.bf16 %v926, %v926
    %v928 = vld [vmem:[%s6] sm:$0xf]
    %v929 = vld [vmem:[%s6 + $0x4] sm:$0xf]
    %v932 = vunpack.c.l.b16 %v928
    %v933 = vunpack.c.l.b16 %v929
    %v934 = vpack.c.b16 %v933, %v932
    %vm936 = vcmask 130048
    %v938 = vsel %vm936, %v927, 0
    %940 = vmatprep.subr.bf16.mxu0 0
    %941 = vmatpush1.bf16.msra.mxu0 %v934
    %942 = vmatprep.subr.bf16.mxu0 0
    %943 = vmatpush1.bf16.msra.mxu0 0
    %944 = vmatprep.subr.bf16.mxu0 0
    %945 = vmatpush1.bf16.msra.mxu0 0
    %946 = vmatprep.subr.bf16.mxu0 0
    %947 = vmatpush1.bf16.msra.mxu0 0
    %948 = vmatprep.subr.bf16.mxu0 0
    %949 = vmatpush1.bf16.msra.mxu0 0
    %950 = vmatprep.subr.bf16.mxu0 0
    %951 = vmatpush1.bf16.msra.mxu0 0
    %952 = vmatprep.subr.bf16.mxu0 0
    %953 = vmatpush1.bf16.msra.mxu0 0
    %954 = vmatprep.subr.bf16.mxu0 0
    %955 = vmatpush1.bf16.msra.mxu0 0
    %956 = vmatprep.subr.bf16.mxu0 0
    %957 = vmatpush1.bf16.msra.mxu0 0
    %958 = vmatprep.subr.bf16.mxu0 0
    %959 = vmatpush1.bf16.msra.mxu0 0
    %960 = vmatprep.subr.bf16.mxu0 0
    %961 = vmatpush1.bf16.msra.mxu0 0
    %962 = vmatprep.subr.bf16.mxu0 0
    %963 = vmatpush1.bf16.msra.mxu0 0
    %964 = vmatprep.subr.bf16.mxu0 0
    %965 = vmatpush1.bf16.msra.mxu0 0
    %966 = vmatprep.subr.bf16.mxu0 0
    %967 = vmatpush1.bf16.msra.mxu0 0
    %968 = vmatprep.subr.bf16.mxu0 0
    %969 = vmatpush1.bf16.msra.mxu0 0
    %970 = vmatprep.subr.bf16.mxu0 0
    %971 = vmatpush1.bf16.msra.mxu0 0
    %972 = vmatprep.mubr.bf16.mxu0 0
    %973 = vmatmul.mubr.bf16.gmra.mrb[0].mxu0 %v938
    %v974 = vpop.f32.mrb[0].mxu0
    %v975 = vadd.f32 0.0, %v974
    %v976 = vpop.f32.mrb[0].mxu0
    %v977 = vpop.f32.mrb[0].mxu0
    %v978 = vpop.f32.mrb[0].mxu0
    %979 = vdwg.mxu0
    %v980 = vmul.f32 %v917, %v975
    %981 = vst [vmem:[#allocation10] sm:$0xff] %v980
    // Predicated region
    $region46: #{tpu_custom_call.1} parent=1 // pred_check
      _
    $region47: #{tpu_custom_call.1} parent=1 // pred_check_branch
      %983 = sbr.rel (0) target = $region49
    $region48: #{tpu_custom_call.1} parent=1 // pred_region
      %s985 = ssub.s32 128, 128
      %986 = vsyncadd [#allocation4], %s985
      %s988 = sshll.u32 [#allocation10], 4
      %s989 = int_to_ptr.vmem [resolvable:$true] %s988
      %991 = dma.vmem_to_hbm [thread:$0]  %s989, 128, %s7, [#allocation4]
    $region49: #{tpu_custom_call.1} parent=1 // pred_fallthru
      _
    // Predicated region
    $region50: #{tpu_custom_call.1} parent=1 // pred_check
      _
    $region51: #{tpu_custom_call.1} parent=1 // pred_check_branch
      %993 = sbr.rel (0) target = $region53
    $region52: #{tpu_custom_call.1} parent=1 // pred_region
      %994 = dma.done [#allocation4], 128
    $region53: #{tpu_custom_call.1} parent=1 // pred_fallthru
      _
    %995 = vsyncpa [#allocation3], 1
    %996 = vsyncpa [#allocation6], 1
    %997 = vsyncpa [#allocation9], 1
    %998 = vsyncpa [#allocation4], 1

</llo_original>
